<compile_context>
chip_gen: v7x
topology: tpu7x:2x2x1
jax: 0.10.0
libtpu: 0.0.40
codegen_flags: <defaults>
</compile_context>

<pallas_src>
import jax
import jax.numpy as jnp
from jax.experimental import pallas as pl
from jax.experimental.pallas import tpu as pltpu

_LANE = 128


def _sublane_multiple(dtype) -> int:
    # Packed dtypes pack along sublanes: f32 -> 8, bf16/f16 -> 16, int8/fp8 -> 32.
    itemsize = jnp.dtype(dtype).itemsize
    return max(8, 32 // max(itemsize, 1))


def _mask_mul_kernel(mask_ref, x_ref, o_ref):
    # mask_ref: (1, PP) block — same block every grid step (stays resident).
    # x_ref / o_ref: (TB, PP) block of flattened (batch*head) rows.
    # Implicit sublane broadcast of the mask row; one full-vreg VPU multiply.
    o_ref[...] = (x_ref[...] * mask_ref[...]).astype(o_ref.dtype)


def simple_mask_forward(mask, x, *, tile_bytes=2 * 1024 * 1024):
    """out = mask * x, with mask of shape (P, P) and x of shape (B, H, P, P)."""
    B, H, P1, P2 = x.shape
    assert mask.shape == (P1, P2), (mask.shape, (P1, P2))
    dtype = x.dtype
    itemsize = jnp.dtype(dtype).itemsize

    BH = B * H
    PP = P1 * P2

    # ---- Lane-dense 2D views (contiguous reshapes, no data movement). -------
    x2 = x.reshape(BH, PP)
    m2 = mask.astype(dtype).reshape(1, PP)

    # ---- Lane padding: keep the last dim a multiple of 128 so the store path
    # is unmasked vst.  No-op for the nominal P=16 (PP=256).
    PPp = ((PP + _LANE - 1) // _LANE) * _LANE
    if PPp != PP:
        x2 = jnp.pad(x2, ((0, 0), (0, PPp - PP)))
        m2 = jnp.pad(m2, ((0, 0), (0, PPp - PP)))

    # ---- Tile sizing (generation-aware budget). ------------------------------
    # Clamp tile_bytes so 4*tile_bytes (double-buffered x + out) + mask stays
    # under v5e's 16 MiB default scoped-VMEM limit; ~2 MiB tiles already sit
    # near the HBM roofline on v5e/v6e/v7x, so no vmem_limit_bytes override.
    tile_bytes = min(tile_bytes, 3 * 1024 * 1024)
    sub = _sublane_multiple(dtype)
    row_bytes = PPp * itemsize
    tb = max(1, tile_bytes // row_bytes)

    # Force >= 4 grid steps when there is enough data to benefit: the
    # ("parallel",) axis then shards across both v7x TensorCores and overlaps
    # DMA with the VPU multiply.  For tiny inputs keep a single step (overhead).
    x_bytes = BH * row_bytes
    min_steps = 4 if x_bytes >= (2 << 20) else 1
    if min_steps > 1:
        tb = min(tb, pl.cdiv(BH, min_steps))

    if tb >= BH:
        tb = BH                              # one block spans the whole row axis
    else:
        tb = max(sub, (tb // sub) * sub)     # sublane-aligned block rows
        tb = min(tb, BH)

    grid = (pl.cdiv(BH, tb),)

    cost = pl.CostEstimate(
        flops=BH * PPp,
        transcendentals=0,
        bytes_accessed=(2 * BH * PPp + PPp) * itemsize,
    )

    out2 = pl.pallas_call(
        _mask_mul_kernel,
        out_shape=jax.ShapeDtypeStruct((BH, PPp), dtype),
        grid_spec=pltpu.PrefetchScalarGridSpec(
            num_scalar_prefetch=0,
            grid=grid,
            in_specs=[
                # mask: same full (1, PPp) row block for every grid step
                pl.BlockSpec((1, PPp), lambda i: (0, 0)),
                # x: tb flattened (batch*head) rows per grid step
                pl.BlockSpec((tb, PPp), lambda i: (i, 0)),
            ],
            out_specs=pl.BlockSpec((tb, PPp), lambda i: (i, 0)),
        ),
        compiler_params=pltpu.CompilerParams(
            dimension_semantics=("parallel",),   # megacore sharding on v7x
        ),
        cost_estimate=cost,
    )(m2, x2)

    if PPp != PP:
        out2 = out2[:, :PP]
    return out2.reshape(B, H, P1, P2)


if __name__ == "__main__":
    key = jax.random.PRNGKey(0)
    kx, km = jax.random.split(key)

    # Nominal module shapes: num_heads=4, num_patches=16.
    B, H, P = 2, 4, 16
    x = jax.random.normal(kx, (B, H, P, P), dtype=jnp.float32)

    # Parameter init per nn.Parameter(torch.zeros(P, P)).
    mask0 = jnp.zeros((P, P), dtype=jnp.float32)
    out = jax.block_until_ready(simple_mask_forward(mask0, x))
    assert jnp.allclose(out, mask0[None, None] * x, atol=1e-6)

    # Non-trivial mask verifies the broadcast multiply end-to-end.
    mask_nz = jax.random.normal(km, (P, P), dtype=jnp.float32)
    out_nz = jax.block_until_ready(simple_mask_forward(mask_nz, x))
    assert jnp.allclose(out_nz, mask_nz[None, None] * x, atol=1e-6, rtol=1e-6)

    # Multi-step tiled path (small tile_bytes forces several grid steps).
    xb = jax.random.normal(kx, (4, 8, 64, 64), dtype=jnp.float32)
    mb = jax.random.normal(km, (64, 64), dtype=jnp.float32)
    ob = jax.block_until_ready(simple_mask_forward(mb, xb, tile_bytes=64 * 1024))
    assert jnp.allclose(ob, mb[None, None] * xb, atol=1e-6, rtol=1e-6)

    # Non-multiple-of-128 lane width (P=12 -> PP=144, padded to 256 internally).
    xo = jax.random.normal(kx, (2, 4, 12, 12), dtype=jnp.float32)
    mo = jax.random.normal(km, (12, 12), dtype=jnp.float32)
    oo = jax.block_until_ready(simple_mask_forward(mo, xo))
    assert jnp.allclose(oo, mo[None, None] * xo, atol=1e-6, rtol=1e-6)

    # >= 2 MiB input exercises the forced >=4-step parallel grid (v7x megacore).
    xl = jax.random.normal(kx, (8, 8, 128, 128), dtype=jnp.float32)
    ml = jax.random.normal(km, (128, 128), dtype=jnp.float32)
    ol = jax.block_until_ready(simple_mask_forward(ml, xl))
    assert jnp.allclose(ol, ml[None, None] * xl, atol=1e-6, rtol=1e-6)

    print("KERNEL_OK")
</pallas_src>

<mosaic_0001>
module attributes {stable_mosaic.version = 11 : i64} {
  func.func @_mask_mul_kernel(%arg0: i32, %arg1: memref<1x256xf32, #tpu.memory_space<vmem>>, %arg2: memref<8x256xf32, #tpu.memory_space<vmem>>, %arg3: memref<8x256xf32, #tpu.memory_space<vmem>>) attributes {dimension_semantics = [#tpu.dimension_semantics<parallel>], iteration_bounds = array<i64: 1>, scalar_prefetch = 0 : i64, scratch_operands = 0 : i64, tpu.core_type = #tpu.core_type<tc>, window_params = [{pipeline_mode = #tpu.pipeline_mode<synchronous>, transform_indices = @transform_0, window_bounds = array<i64: 1, 256>}, {transform_indices = @transform_1, window_bounds = array<i64: 8, 256>}, {transform_indices = @transform_2, window_bounds = array<i64: 8, 256>}]} {
    %c0 = arith.constant 0 : index
    %c0_0 = arith.constant 0 : index
    %0 = vector.load %arg2[%c0, %c0_0] : memref<8x256xf32, #tpu.memory_space<vmem>>, vector<8x256xf32>
    %c0_1 = arith.constant 0 : index
    %c0_2 = arith.constant 0 : index
    %1 = vector.load %arg1[%c0_1, %c0_2] : memref<1x256xf32, #tpu.memory_space<vmem>>, vector<1x256xf32>
    %2 = vector.broadcast %1 : vector<1x256xf32> to vector<8x256xf32>
    %3 = arith.mulf %0, %2 : vector<8x256xf32>
    %c0_3 = arith.constant 0 : index
    %c0_4 = arith.constant 0 : index
    %4 = vector.load %arg3[%c0_3, %c0_4] : memref<8x256xf32, #tpu.memory_space<vmem>>, vector<8x256xf32>
    tpu.vector_store %arg3[%c0_3, %c0_4], %3 {strides = array<i32>} : memref<8x256xf32, #tpu.memory_space<vmem>>, vector<8x256xf32>,
    return
  }
  func.func @transform_0(%arg0: i32) -> (i32, i32) {
    %c0_i32 = arith.constant 0 : i32
    %c0_i32_0 = arith.constant 0 : i32
    %c0_i32_1 = arith.constant 0 : i32
    return %c0_i32, %c0_i32_0 : i32, i32
  }
  func.func @transform_1(%arg0: i32) -> (i32, i32) {
    %c0_i32 = arith.constant 0 : i32
    %c0_i32_0 = arith.constant 0 : i32
    return %arg0, %c0_i32 : i32, i32
  }
  func.func @transform_2(%arg0: i32) -> (i32, i32) {
    %c0_i32 = arith.constant 0 : i32
    %c0_i32_0 = arith.constant 0 : i32
    return %arg0, %c0_i32 : i32, i32
  }
}

</mosaic_0001>

<llo_original>
// kernel: tpu_custom_call.1
$region0: #{tpu_custom_call.1}
  #allocation0 [shape = 'u32[]', space=smem, size = 0x4, offset = 0x4, fixed_abs, tag = 'smem constant byte address 0x4 - core index']
  #allocation1 [shape = 'u32[144,128]{1,0:T(1,128)}', space=vmem, size = 0x12000, scoped, tag = 'internal scratch']
  %s0 = inlined_call_operand.hbm [shape: f32[1,256], index: 0, kind: input, shape index: {}]
  %s1 = inlined_call_operand.hbm [shape: f32[8,256], index: 1, kind: input, shape index: {}]
  %s2 = inlined_call_operand.hbm [shape: f32[8,256], index: 2, kind: output, shape index: {}]
  %s3 = sld [smem:[#allocation0]]
  $region26: #{tpu_custom_call.1} parent=0
    _
  %s5 = ssub.s32 1, %s3
  %s6 = scalar_select 0, %s5, %s3
  $region1: #{tpu_custom_call.1} parent=0
    #allocation2 [shape = 'u8[1024]{0}', space=vmem, size = 0x400, scoped, tag = 'input window, operand 0, single buffered']
    #allocation3 [shape = 's32[1]{0}', space=sflag, size = 0x4, scoped, tag = 'scoped memory for tpu_custom_call.1']
    #allocation4 [shape = 's32[1]{0}', space=sflag, size = 0x4, scoped, tag = 'scoped memory for tpu_custom_call.1']
    #allocation5 [shape = 'u8[8192]{0}', space=vmem, size = 0x2000, scoped, tag = 'input window, operand 1, single buffered']
    #allocation6 [shape = 's32[1]{0}', space=sflag, size = 0x4, scoped, tag = 'scoped memory for tpu_custom_call.1']
    #allocation7 [shape = 'u8[8192]{0}', space=vmem, size = 0x2000, scoped, tag = 'output window, operand 0, single buffered']
    %7 = vsyncpa [#allocation3], 0
    %8 = vsyncpa [#allocation6], 0
    %9 = vsyncpa [#allocation4], 0
    // Predicated region
    $region2: #{tpu_custom_call.1} parent=1 // pred_check
      _
    $region3: #{tpu_custom_call.1} parent=1 // pred_check_branch
      %11 = sbr.rel (0) target = $region5
    $region4: #{tpu_custom_call.1} parent=1 // pred_region
      %s13 = ssub.s32 32, 32
      %14 = vsyncadd [#allocation3], %s13
      %s16 = sshll.u32 [#allocation2], 4
      %s17 = int_to_ptr.vmem [resolvable:$true] %s16
      %19 = dma.hbm_to_vmem [thread:$0]  %s0, 32, %s17, [#allocation3]
    $region5: #{tpu_custom_call.1} parent=1 // pred_fallthru
      _
    // Predicated region
    $region6: #{tpu_custom_call.1} parent=1 // pred_check
      _
    $region7: #{tpu_custom_call.1} parent=1 // pred_check_branch
      %21 = sbr.rel (0) target = $region9
    $region8: #{tpu_custom_call.1} parent=1 // pred_region
      %s23 = ssub.s32 256, 256
      %24 = vsyncadd [#allocation6], %s23
      %s26 = sshll.u32 [#allocation5], 4
      %s27 = int_to_ptr.vmem [resolvable:$true] %s26
      %29 = dma.hbm_to_vmem [thread:$0]  %s1, 256, %s27, [#allocation6]
    $region9: #{tpu_custom_call.1} parent=1 // pred_fallthru
      _
    // Predicated region
    $region10: #{tpu_custom_call.1} parent=1 // pred_check
      _
    $region11: #{tpu_custom_call.1} parent=1 // pred_check_branch
      %31 = sbr.rel (0) target = $region13
    $region12: #{tpu_custom_call.1} parent=1 // pred_region
      %32 = dma.done [#allocation3], 32
    $region13: #{tpu_custom_call.1} parent=1 // pred_fallthru
      _
    // Predicated region
    $region14: #{tpu_custom_call.1} parent=1 // pred_check
      _
    $region15: #{tpu_custom_call.1} parent=1 // pred_check_branch
      %34 = sbr.rel (0) target = $region17
    $region16: #{tpu_custom_call.1} parent=1 // pred_region
      %35 = dma.done [#allocation6], 256
    $region17: #{tpu_custom_call.1} parent=1 // pred_fallthru
      _
    %v36 = vld [vmem:[#allocation5] sm:$0xff]
    %v37 = vld [vmem:[#allocation5 + $0x8] sm:$0xff]
    %v38 = vld [vmem:[#allocation2] sm:$0x3]
    %v40 = vlaneseq
    %v41 = vshrl.u32 %v40, 7
    %v42 = vsub.s32 0, %v41
    %v43 = vrot.slane %v38, %v42
    %v44 = vlaneseq
    %v45 = vshrl.u32 %v44, 7
    %v46 = vsub.s32 1, %v45
    %v47 = vrot.slane %v38, %v46
    %v50 = vmul.f32 %v36, %v43
    %v51 = vmul.f32 %v37, %v47
    %52 = vst [vmem:[#allocation7] sm:$0xff] %v50
    %53 = vst [vmem:[#allocation7 + $0x8] sm:$0xff] %v51
    // Predicated region
    $region18: #{tpu_custom_call.1} parent=1 // pred_check
      _
    $region19: #{tpu_custom_call.1} parent=1 // pred_check_branch
      %55 = sbr.rel (0) target = $region21
    $region20: #{tpu_custom_call.1} parent=1 // pred_region
      %s57 = ssub.s32 256, 256
      %58 = vsyncadd [#allocation4], %s57
      %s60 = sshll.u32 [#allocation7], 4
      %s61 = int_to_ptr.vmem [resolvable:$true] %s60
      %63 = dma.vmem_to_hbm [thread:$0]  %s61, 256, %s2, [#allocation4]
    $region21: #{tpu_custom_call.1} parent=1 // pred_fallthru
      _
    // Predicated region
    $region22: #{tpu_custom_call.1} parent=1 // pred_check
      _
    $region23: #{tpu_custom_call.1} parent=1 // pred_check_branch
      %65 = sbr.rel (0) target = $region25
    $region24: #{tpu_custom_call.1} parent=1 // pred_region
      %66 = dma.done [#allocation4], 256
    $region25: #{tpu_custom_call.1} parent=1 // pred_fallthru
      _
    %67 = vsyncpa [#allocation3], 1
    %68 = vsyncpa [#allocation6], 1
    %69 = vsyncpa [#allocation4], 1

</llo_original>
